<compile_context>
chip_gen: v7x
topology: tpu7x:2x2x1
jax: 0.10.0
libtpu: 0.0.40
codegen_flags: <defaults>
</compile_context>

<pallas_src>
import numpy as np
import jax
import jax.numpy as jnp
from jax.experimental import pallas as pl
from jax.experimental.pallas import tpu as pltpu


def _round_up(x, m):
    return (x + m - 1) // m * m


def _gated_mp_kernel(gate_ref, x_ref, g_ref, pa_ref, wsel_ref, bmask_ref,
                     w_ref, b_ref, o_ref):
    """One grid step processes a block of `bb` batch elements.

    gate_ref  (1, 1)      f32   tanh(gate), SMEM scalar
    x_ref     (bb, S, Dp) f32   token embeddings (residual kept exact in f32)
    g_ref     (bb, N, S)  bf16  one-hot gather  (tokens2elements)
    pa_ref    (bb, S, N)  bf16  scatter with adjacency folded in: P @ A_norm
    wsel_ref  (bb, 1, 1)  f32   1.0 if GCN linear runs for this batch, else 0.0
    bmask_ref (bb, S, 1)  f32   token rows that receive the GCN bias
    w_ref     (Dp, Dp)    bf16  GCN weight  (resident across grid steps)
    b_ref     (1, 1, Dp)  f32   GCN bias    (resident across grid steps)
    """
    x = x_ref[...]                                   # (bb, S, Dp) f32
    x_bf = x.astype(jnp.bfloat16)

    # gather tokens -> elements
    elem = jnp.einsum('bns,bsd->bnd', g_ref[...], x_bf,
                      preferred_element_type=jnp.float32)          # (bb, N, Dp)

    # GCNConv linear (bf16 MXU, f32 accumulation); selected per batch
    bb = elem.shape[0]
    w_b = jnp.broadcast_to(w_ref[...], (bb,) + w_ref.shape)         # (bb, Dp, Dp)
    h_w = jnp.einsum('bnd,bde->bne', elem.astype(jnp.bfloat16), w_b,
                     preferred_element_type=jnp.float32)            # (bb, N, Dp)
    f = wsel_ref[...]                                               # (bb, 1, 1)
    h = elem + f * (h_w - elem)                                     # select GNN / passthrough

    # scatter back to tokens with the normalized adjacency pre-folded in
    scat = jnp.einsum('bsn,bnd->bsd', pa_ref[...], h.astype(jnp.bfloat16),
                      preferred_element_type=jnp.float32)           # (bb, S, Dp)
    scat = scat + bmask_ref[...] * b_ref[...]                       # bias only on GNN-touched rows

    o_ref[...] = x + gate_ref[0, 0] * scat                          # gated residual (f32)


def gated_causal_message_passing(x, gather, pa, wsel, bmask, w, bias, gate,
                                 *, batch_block=1):
    """x:(B,S,D) f32, gather:(B,N,S), pa:(B,S,N), wsel:(B,), bmask:(B,S),
    w:(D,D), bias:(D,), gate:(1,). Returns (B,S,D) f32."""
    B, S, D = x.shape
    N = gather.shape[1]
    Dp = _round_up(D, 128)        # lane-dense hidden dim

    x_p = jnp.pad(x.astype(jnp.float32), ((0, 0), (0, 0), (0, Dp - D)))
    w_p = jnp.pad(w.astype(jnp.float32), ((0, Dp - D), (0, Dp - D))).astype(jnp.bfloat16)
    b_p = jnp.pad(bias.astype(jnp.float32), ((0, Dp - D),)).reshape(1, 1, Dp)

    g_p = gather.astype(jnp.bfloat16)
    pa_p = pa.astype(jnp.bfloat16)
    wsel_p = wsel.astype(jnp.float32).reshape(B, 1, 1)
    bmask_p = bmask.astype(jnp.float32).reshape(B, S, 1)
    gate_t = jnp.tanh(gate.astype(jnp.float32)).reshape(1, 1)

    bb = int(max(1, min(batch_block, B)))
    nb = pl.cdiv(B, bb)
    Bp = nb * bb
    if Bp != B:   # pad batch so the grid divides evenly; padded batches compute out = 0 + 0
        pad_b = lambda a: jnp.pad(a, ((0, Bp - B),) + ((0, 0),) * (a.ndim - 1))
        x_p, g_p, pa_p, wsel_p, bmask_p = map(pad_b, (x_p, g_p, pa_p, wsel_p, bmask_p))

    out = pl.pallas_call(
        _gated_mp_kernel,
        out_shape=jax.ShapeDtypeStruct((Bp, S, Dp), jnp.float32),
        grid=(nb,),
        in_specs=[
            pl.BlockSpec(memory_space=pltpu.MemorySpace.SMEM),      # tanh(gate) scalar
            pl.BlockSpec((bb, S, Dp), lambda i: (i, 0, 0)),         # x
            pl.BlockSpec((bb, N, S), lambda i: (i, 0, 0)),          # gather one-hot
            pl.BlockSpec((bb, S, N), lambda i: (i, 0, 0)),          # P @ A_norm
            pl.BlockSpec((bb, 1, 1), lambda i: (i, 0, 0)),          # GNN-select flag
            pl.BlockSpec((bb, S, 1), lambda i: (i, 0, 0)),          # bias token mask
            pl.BlockSpec((Dp, Dp), lambda i: (0, 0)),               # W (resident)
            pl.BlockSpec((1, 1, Dp), lambda i: (0, 0, 0)),          # bias (resident)
        ],
        out_specs=pl.BlockSpec((bb, S, Dp), lambda i: (i, 0, 0)),
        compiler_params=pltpu.CompilerParams(
            dimension_semantics=("parallel",)),
    )(gate_t, x_p, g_p, pa_p, wsel_p, bmask_p, w_p, b_p)

    return out[:B, :, :D]


def per_batch_matrices(mpd, S, N_max):
    """Host glue: dense gather / (scatter @ normalized adjacency) / flags that
    replicate the module's control flow (empty tokens2elements -> zeros;
    empty edge_index -> GNN skipped)."""
    t2e = np.asarray(mpd['tokens2elements'], dtype=np.int64).reshape(-1)
    e2t = np.asarray(mpd['elements2tokens'], dtype=np.int64).reshape(-1)
    ei = np.asarray(mpd['edge_index'], dtype=np.int64).reshape(2, -1)
    n = t2e.size
    G = np.zeros((N_max, S), np.float32)
    P = np.zeros((S, N_max), np.float32)
    A = np.eye(N_max, dtype=np.float32)   # identity => GNN skipped (pure scatter)
    wsel = np.float32(0.0)
    if n > 0:
        G[np.arange(n), t2e] = 1.0
        P[e2t, np.arange(n)] = 1.0
        if ei.size > 0:
            # GCNConv: A[dst, src] per edge, remaining self loops, symmetric norm.
            A = np.zeros((N_max, N_max), np.float32)
            A[ei[1], ei[0]] = 1.0
            idx = np.arange(n)
            A[idx, idx] = np.where(A[idx, idx] > 0, A[idx, idx], 1.0)
            deg = A[:n, :n].sum(axis=1)
            dinv = np.zeros((N_max,), np.float32)
            dinv[:n] = np.where(deg > 0, 1.0 / np.sqrt(np.maximum(deg, 1e-12)), 0.0)
            A = A * dinv[:, None] * dinv[None, :]
            wsel = np.float32(1.0)
    PA = (P @ A).astype(np.float32)                       # (S, N_max)
    bmask = (float(wsel) * P.sum(axis=1)).astype(np.float32)  # (S,)
    return G, PA, wsel, bmask


def reference_forward(x, mpds, W, bias, gate):
    """Pure-numpy replica of GatedCausalMessagePassingLayer.forward (gcn)."""
    outs = []
    for b, mpd in enumerate(mpds):
        xb = x[b]
        new = np.zeros_like(xb)
        t2e = np.asarray(mpd['tokens2elements'], np.int64).reshape(-1)
        e2t = np.asarray(mpd['elements2tokens'], np.int64).reshape(-1)
        ei = np.asarray(mpd['edge_index'], np.int64).reshape(2, -1)
        if t2e.size > 0:
            elem = xb[t2e]
            if ei.size > 0:
                n = t2e.size
                A = np.zeros((n, n), np.float32)
                A[ei[1], ei[0]] = 1.0
                idx = np.arange(n)
                A[idx, idx] = np.where(A[idx, idx] > 0, A[idx, idx], 1.0)
                deg = A.sum(axis=1)
                dinv = np.where(deg > 0, 1.0 / np.sqrt(deg), 0.0)
                A = A * dinv[:, None] * dinv[None, :]
                elem = A @ (elem @ W) + bias
            new[e2t] = elem
        outs.append(xb + np.tanh(gate) * new)
    return np.stack(outs)


if __name__ == "__main__":
    B, S, D, N_max = 4, 16, 32, 4  # batch, seq, embedding_size, max graph elements / batch

    key = jax.random.PRNGKey(0)
    k1, k2, k3, k4 = jax.random.split(key, 4)
    x = jax.random.normal(k1, (B, S, D), dtype=jnp.float32)

    # Parameters (module __init__ shapes): GCNConv(D, D) -> weight (D, D), bias (D,);
    # gating_message_passing -> shape (1,). Nonzero values so the MP path is exercised.
    W = np.asarray(jax.random.normal(k2, (D, D), dtype=jnp.float32)) / np.sqrt(D)
    bias = np.asarray(jax.random.normal(k3, (D,), dtype=jnp.float32)) * 0.1
    gate = np.asarray(jax.random.normal(k4, (1,), dtype=jnp.float32)) * 0.5

    # Synthetic message_passing_dicts covering: edges / edges / no edges / empty.
    mpds = [
        {'tokens2elements': [1, 4, 7, 10],
         'elements2tokens': [2, 5, 8, 11],
         'edge_index': [[0, 1, 2], [1, 2, 3]]},
        {'tokens2elements': [0, 3, 6],
         'elements2tokens': [1, 4, 7],
         'edge_index': [[0, 1], [2, 2]]},
        {'tokens2elements': [2, 6],
         'elements2tokens': [3, 7],
         'edge_index': []},                 # GNN layer skipped
        {'tokens2elements': [],
         'elements2tokens': [],
         'edge_index': []},                 # no graph elements at all
    ]

    Gs, PAs, Fs, Ms = [], [], [], []
    for mpd in mpds:
        G, PA, f, m = per_batch_matrices(mpd, S, N_max)
        Gs.append(G); PAs.append(PA); Fs.append(f); Ms.append(m)

    gather = jnp.asarray(np.stack(Gs))            # (B, N, S)
    pa = jnp.asarray(np.stack(PAs))               # (B, S, N)
    wsel = jnp.asarray(np.stack(Fs))              # (B,)
    bmask = jnp.asarray(np.stack(Ms))             # (B, S)

    out = gated_causal_message_passing(
        x, gather, pa, wsel, bmask,
        jnp.asarray(W), jnp.asarray(bias), jnp.asarray(gate),
        batch_block=2)                            # grid = (2,): fat steps + 2 parallel steps
    out = jax.block_until_ready(out)

    ref = reference_forward(np.asarray(x), mpds, W, bias, float(gate[0]))
    np.testing.assert_allclose(np.asarray(out), ref, rtol=2e-2, atol=2e-2)

    print("KERNEL_OK")
</pallas_src>

<mosaic_0001>
module attributes {stable_mosaic.version = 11 : i64} {
  func.func @_gated_mp_kernel(%arg0: i32, %arg1: memref<1x1xf32, #tpu.memory_space<smem>>, %arg2: memref<2x16x128xf32, #tpu.memory_space<vmem>>, %arg3: memref<2x4x16xbf16, #tpu.memory_space<vmem>>, %arg4: memref<2x16x4xbf16, #tpu.memory_space<vmem>>, %arg5: memref<2x1x1xf32, #tpu.memory_space<vmem>>, %arg6: memref<2x16x1xf32, #tpu.memory_space<vmem>>, %arg7: memref<128x128xbf16, #tpu.memory_space<vmem>>, %arg8: memref<1x1x128xf32, #tpu.memory_space<vmem>>, %arg9: memref<2x16x128xf32, #tpu.memory_space<vmem>>) attributes {dimension_semantics = [#tpu.dimension_semantics<parallel>], iteration_bounds = array<i64: 2>, scalar_prefetch = 0 : i64, scratch_operands = 0 : i64, tpu.core_type = #tpu.core_type<tc>, window_params = [{transform_indices = @transform_0, window_bounds = array<i64: 1, 1>}, {transform_indices = @transform_1, window_bounds = array<i64: 2, 16, 128>}, {transform_indices = @transform_2, window_bounds = array<i64: 2, 4, 16>}, {transform_indices = @transform_3, window_bounds = array<i64: 2, 16, 4>}, {transform_indices = @transform_4, window_bounds = array<i64: 2, 1, 1>}, {transform_indices = @transform_5, window_bounds = array<i64: 2, 16, 1>}, {pipeline_mode = #tpu.pipeline_mode<synchronous>, transform_indices = @transform_6, window_bounds = array<i64: 128, 128>}, {pipeline_mode = #tpu.pipeline_mode<synchronous>, transform_indices = @transform_7, window_bounds = array<i64: 1, 1, 128>}, {transform_indices = @transform_8, window_bounds = array<i64: 2, 16, 128>}]} {
    %c0 = arith.constant 0 : index
    %c0_0 = arith.constant 0 : index
    %c0_1 = arith.constant 0 : index
    %0 = vector.load %arg2[%c0, %c0_0, %c0_1] : memref<2x16x128xf32, #tpu.memory_space<vmem>>, vector<2x16x128xf32>
    %1 = arith.truncf %0 : vector<2x16x128xf32> to vector<2x16x128xbf16>
    %c0_2 = arith.constant 0 : index
    %c0_3 = arith.constant 0 : index
    %c0_4 = arith.constant 0 : index
    %2 = vector.load %arg3[%c0_2, %c0_3, %c0_4] : memref<2x4x16xbf16, #tpu.memory_space<vmem>>, vector<2x4x16xbf16>
    "tpu.trace_start"() <{level = 10 : i32, message = "bns,bsd->bnd"}> : () -> ()
    %cst = arith.constant dense<0.000000e+00> : vector<2x4x128xf32>
    %3 = tpu.matmul %2, %1, %cst {dimension_numbers = #tpu.dot_dimension_numbers<[2], [1], [1], [2], [0, 0, 0, 1, 1, 2], [0], [0]>} : vector<2x4x16xbf16>, vector<2x16x128xbf16>, vector<2x4x128xf32> -> vector<2x4x128xf32>
    "tpu.trace_stop"() : () -> ()
    %c0_5 = arith.constant 0 : index
    %c0_6 = arith.constant 0 : index
    %4 = vector.load %arg7[%c0_5, %c0_6] : memref<128x128xbf16, #tpu.memory_space<vmem>>, vector<128x128xbf16>
    %5 = vector.shape_cast %4 : vector<128x128xbf16> to vector<1x128x128xbf16>
    %6 = vector.broadcast %5 : vector<1x128x128xbf16> to vector<2x128x128xbf16>
    %7 = arith.truncf %3 : vector<2x4x128xf32> to vector<2x4x128xbf16>
    "tpu.trace_start"() <{level = 10 : i32, message = "bnd,bde->bne"}> : () -> ()
    %cst_7 = arith.constant dense<0.000000e+00> : vector<2x4x128xf32>
    %8 = tpu.matmul %7, %6, %cst_7 {dimension_numbers = #tpu.dot_dimension_numbers<[2], [1], [1], [2], [0, 0, 0, 1, 1, 2], [0], [0]>} : vector<2x4x128xbf16>, vector<2x128x128xbf16>, vector<2x4x128xf32> -> vector<2x4x128xf32>
    "tpu.trace_stop"() : () -> ()
    %c0_8 = arith.constant 0 : index
    %c0_9 = arith.constant 0 : index
    %c0_10 = arith.constant 0 : index
    %9 = vector.load %arg5[%c0_8, %c0_9, %c0_10] : memref<2x1x1xf32, #tpu.memory_space<vmem>>, vector<2x1x1xf32>
    %10 = arith.subf %8, %3 : vector<2x4x128xf32>
    %11 = vector.broadcast %9 : vector<2x1x1xf32> to vector<2x4x128xf32>
    %12 = arith.mulf %11, %10 : vector<2x4x128xf32>
    %13 = arith.addf %3, %12 : vector<2x4x128xf32>
    %c0_11 = arith.constant 0 : index
    %c0_12 = arith.constant 0 : index
    %c0_13 = arith.constant 0 : index
    %14 = vector.load %arg4[%c0_11, %c0_12, %c0_13] : memref<2x16x4xbf16, #tpu.memory_space<vmem>>, vector<2x16x4xbf16>
    %15 = arith.truncf %13 : vector<2x4x128xf32> to vector<2x4x128xbf16>
    "tpu.trace_start"() <{level = 10 : i32, message = "bsn,bnd->bsd"}> : () -> ()
    %cst_14 = arith.constant dense<0.000000e+00> : vector<2x16x128xf32>
    %16 = tpu.matmul %14, %15, %cst_14 {dimension_numbers = #tpu.dot_dimension_numbers<[2], [1], [1], [2], [0, 0, 0, 1, 1, 2], [0], [0]>} : vector<2x16x4xbf16>, vector<2x4x128xbf16>, vector<2x16x128xf32> -> vector<2x16x128xf32>
    "tpu.trace_stop"() : () -> ()
    %c0_15 = arith.constant 0 : index
    %c0_16 = arith.constant 0 : index
    %c0_17 = arith.constant 0 : index
    %17 = vector.load %arg6[%c0_15, %c0_16, %c0_17] : memref<2x16x1xf32, #tpu.memory_space<vmem>>, vector<2x16x1xf32>
    %c0_18 = arith.constant 0 : index
    %c0_19 = arith.constant 0 : index
    %c0_20 = arith.constant 0 : index
    %18 = vector.load %arg8[%c0_18, %c0_19, %c0_20] : memref<1x1x128xf32, #tpu.memory_space<vmem>>, vector<1x1x128xf32>
    %19 = vector.broadcast %17 : vector<2x16x1xf32> to vector<2x16x128xf32>
    %20 = vector.broadcast %18 : vector<1x1x128xf32> to vector<2x16x128xf32>
    %21 = arith.mulf %19, %20 : vector<2x16x128xf32>
    %22 = arith.addf %16, %21 : vector<2x16x128xf32>
    %c0_21 = arith.constant 0 : index
    %c0_22 = arith.constant 0 : index
    %23 = memref.load %arg1[%c0_21, %c0_22] : memref<1x1xf32, #tpu.memory_space<smem>>
    %24 = vector.broadcast %23 : f32 to vector<2x16x128xf32>
    %25 = arith.mulf %24, %22 : vector<2x16x128xf32>
    %26 = arith.addf %0, %25 : vector<2x16x128xf32>
    %c0_23 = arith.constant 0 : index
    %c0_24 = arith.constant 0 : index
    %c0_25 = arith.constant 0 : index
    %27 = vector.load %arg9[%c0_23, %c0_24, %c0_25] : memref<2x16x128xf32, #tpu.memory_space<vmem>>, vector<2x16x128xf32>
    tpu.vector_store %arg9[%c0_23, %c0_24, %c0_25], %26 {strides = array<i32>} : memref<2x16x128xf32, #tpu.memory_space<vmem>>, vector<2x16x128xf32>,
    return
  }
  func.func @transform_0(%arg0: i32) -> (i32, i32) {
    %c0_i32 = arith.constant 0 : i32
    %c0_i32_0 = arith.constant 0 : i32
    %c0_i32_1 = arith.constant 0 : i32
    return %c0_i32, %c0_i32_0 : i32, i32
  }
  func.func @transform_1(%arg0: i32) -> (i32, i32, i32) {
    %c0_i32 = arith.constant 0 : i32
    %c0_i32_0 = arith.constant 0 : i32
    %c0_i32_1 = arith.constant 0 : i32
    return %arg0, %c0_i32, %c0_i32_0 : i32, i32, i32
  }
  func.func @transform_2(%arg0: i32) -> (i32, i32, i32) {
    %c0_i32 = arith.constant 0 : i32
    %c0_i32_0 = arith.constant 0 : i32
    %c0_i32_1 = arith.constant 0 : i32
    return %arg0, %c0_i32, %c0_i32_0 : i32, i32, i32
  }
  func.func @transform_3(%arg0: i32) -> (i32, i32, i32) {
    %c0_i32 = arith.constant 0 : i32
    %c0_i32_0 = arith.constant 0 : i32
    %c0_i32_1 = arith.constant 0 : i32
    return %arg0, %c0_i32, %c0_i32_0 : i32, i32, i32
  }
  func.func @transform_4(%arg0: i32) -> (i32, i32, i32) {
    %c0_i32 = arith.constant 0 : i32
    %c0_i32_0 = arith.constant 0 : i32
    %c0_i32_1 = arith.constant 0 : i32
    return %arg0, %c0_i32, %c0_i32_0 : i32, i32, i32
  }
  func.func @transform_5(%arg0: i32) -> (i32, i32, i32) {
    %c0_i32 = arith.constant 0 : i32
    %c0_i32_0 = arith.constant 0 : i32
    %c0_i32_1 = arith.constant 0 : i32
    return %arg0, %c0_i32, %c0_i32_0 : i32, i32, i32
  }
  func.func @transform_6(%arg0: i32) -> (i32, i32) {
    %c0_i32 = arith.constant 0 : i32
    %c0_i32_0 = arith.constant 0 : i32
    %c0_i32_1 = arith.constant 0 : i32
    return %c0_i32, %c0_i32_0 : i32, i32
  }
  func.func @transform_7(%arg0: i32) -> (i32, i32, i32) {
    %c0_i32 = arith.constant 0 : i32
    %c0_i32_0 = arith.constant 0 : i32
    %c0_i32_1 = arith.constant 0 : i32
    %c0_i32_2 = arith.constant 0 : i32
    return %c0_i32, %c0_i32_0, %c0_i32_1 : i32, i32, i32
  }
  func.func @transform_8(%arg0: i32) -> (i32, i32, i32) {
    %c0_i32 = arith.constant 0 : i32
    %c0_i32_0 = arith.constant 0 : i32
    %c0_i32_1 = arith.constant 0 : i32
    return %arg0, %c0_i32, %c0_i32_0 : i32, i32, i32
  }
}

</mosaic_0001>

<llo_original>
// kernel: tpu_custom_call.1
$region0: #{tpu_custom_call.1}
  #allocation0 [shape = 'u32[]', space=smem, size = 0x4, offset = 0x4, fixed_abs, tag = 'smem constant byte address 0x4 - core index']
  #allocation1 [shape = 'u32[144,128]{1,0:T(1,128)}', space=vmem, size = 0x12000, scoped, tag = 'internal scratch']
  #allocation2 [shape = 'f32[1,1]{1,0:T(1,128)S(6)}', space=smem, size = 0x200, scoped, tag = 'scoped memory for tpu_custom_call.1']
  %s0 = inlined_call_operand.<no memory space> [shape: f32[1,1], index: 0, kind: input, shape index: {}]
  %s1 = inlined_call_operand.vmem [shape: f32[4,16,128], index: 1, kind: input, shape index: {}]
  %s2 = inlined_call_operand.hbm [shape: bf16[4,4,16], index: 2, kind: input, shape index: {}]
  %s3 = inlined_call_operand.vmem [shape: bf16[4,16,4], index: 3, kind: input, shape index: {}]
  %s4 = inlined_call_operand.vmem [shape: f32[4,1,1], index: 4, kind: input, shape index: {}]
  %s5 = inlined_call_operand.vmem [shape: f32[4,16,1], index: 5, kind: input, shape index: {}]
  %s6 = inlined_call_operand.vmem [shape: bf16[128,128], index: 6, kind: input, shape index: {}]
  %s7 = inlined_call_operand.vmem [shape: f32[1,1,128], index: 7, kind: input, shape index: {}]
  %s8 = inlined_call_operand.hbm [shape: f32[4,16,128], index: 8, kind: output, shape index: {}]
  %s9 = sld [smem:[#allocation0]]
  $region69: #{tpu_custom_call.1} parent=0
    _
  %s11 = ssub.s32 1, %s9
  %s12 = scalar_select 0, %s11, %s9
  %13 = sst [smem:[#allocation2]] %s0
  $region1: #{tpu_custom_call.1} parent=0
    #allocation3 [shape = 'u8[4096]{0}', space=vmem, size = 0x1000, scoped, tag = 'input window, operand 2']
    #allocation4 [shape = 's32[2]{0}', space=sflag, size = 0x8, scoped, tag = 'scoped memory for tpu_custom_call.1']
    #allocation5 [shape = 's32[2]{0}', space=sflag, size = 0x8, scoped, tag = 'scoped memory for tpu_custom_call.1']
    #allocation6 [shape = 'u8[32768]{0}', space=vmem, size = 0x8000, scoped, tag = 'output window, operand 0']
    %14 = vsyncpa [#allocation4], 0
    %s15 = scalar_lea.sflag [#allocation4], 1
    %16 = vsyncpa %s15, 0
    %17 = vsyncpa [#allocation5], 0
    %s18 = scalar_lea.sflag [#allocation5], 1
    %19 = vsyncpa %s18, 0
    loop: start=0, step=1, limit=4
    $region2: #{tpu_custom_call.1} parent=1 // loop_pre_header
      _
    $region3: #{tpu_custom_call.1} parent=1 // loop_header
      %s21 = sphi 0, %s25
      %p22 = scmp.ge.s32.totalorder %s21, 4
      %s29 = sphi 0, %s29
      %s31 = sphi 0, %s29
      %s32 = sphi 0, %s31
      %s46 = sphi 0, %s32
      %s52 = sphi 0, %s54
      %s55 = sphi 0, %s52
      %s56 = sphi 0, %s55
      %s72 = sphi 0, %s56
      %s78 = sphi 0, %s80
      %s81 = sphi 0, %s78
      %s82 = sphi 0, %s81
      %s98 = sphi 0, %s82
      %s104 = sphi 0, %s106
      %s107 = sphi 0, %s104
      %s108 = sphi 0, %s107
      %s124 = sphi 0, %s108
      %s130 = sphi 0, %s132
      %s133 = sphi 0, %s130
      %s134 = sphi 0, %s133
      %s150 = sphi 0, %s134
      %s156 = sphi 0, %s158
      %s159 = sphi 0, %s156
      %s160 = sphi 0, %s159
      %s176 = sphi 0, %s160
      %s180 = sphi 0, %s180
      %s182 = sphi 0, %s180
      %s183 = sphi 0, %s182
      %s197 = sphi 0, %s183
      %s201 = sphi 0, %s201
      %s203 = sphi 0, %s201
      %s204 = sphi 0, %s203
      %s218 = sphi 0, %s204
      %s224 = sphi 0, %s226
      %s227 = sphi 0, %s224
      %s228 = sphi 0, %s227
      %s244 = sphi 0, %s228
    $region4: #{tpu_custom_call.1} parent=1 // loop_header_branch
      %24 = sbr.rel (%p22) target = $region8
    $region5: #{tpu_custom_call.1} parent=1 // loop_body
      %s26 = ssub.s32 %s21, 1
      %s27 = ssub.s32 %s21, 2
      %s28 = sadd.s32 %s21, 1
      %s30 = sadd.s32 %s29, 1
      %p33 = scmp.eq.s32.totalorder %s21, 1
      %p34 = scmp.ne.s32.totalorder %s29, %s31
      %p35 = scmp.eq.s32.totalorder %s21, 0
      %p36 = por %p34, %p35
      %p37 = scmp.ne.s32.totalorder %s29, %s31
      %p38 = scmp.eq.s32.totalorder %s26, 1
      %p39 = por %p37, %p38
      %p40 = scmp.ne.s32.totalorder %s31, %s32
      %p41 = scmp.eq.s32.totalorder %s26, 0
      %p42 = por %p40, %p41
      %p43 = scmp.ne.s32.totalorder %s31, %s32
      %p44 = scmp.eq.s32.totalorder %s27, 1
      %p45 = por %p43, %p44
      %p47 = scmp.ne.s32.totalorder %s32, %s46
      %p48 = scmp.eq.s32.totalorder %s27, 0
      %p49 = por %p47, %p48
      %s50 = ssub.s32 %s21, %s28
      %p51 = scmp.eq.s32.totalorder %s50, 0
      %s53 = sadd.s32 %s52, 1
      %s54 = scalar_select %p51, %s52, %s53
      %p57 = pneg %p51
      %p58 = scmp.eq.s32.totalorder %s21, 1
      %p59 = por %p57, %p58
      %p60 = scmp.ne.s32.totalorder %s52, %s55
      %p61 = scmp.eq.s32.totalorder %s21, 0
      %p62 = por %p60, %p61
      %p63 = scmp.ne.s32.totalorder %s52, %s55
      %p64 = scmp.eq.s32.totalorder %s26, 1
      %p65 = por %p63, %p64
      %p66 = scmp.ne.s32.totalorder %s55, %s56
      %p67 = scmp.eq.s32.totalorder %s26, 0
      %p68 = por %p66, %p67
      %p69 = scmp.ne.s32.totalorder %s55, %s56
      %p70 = scmp.eq.s32.totalorder %s27, 1
      %p71 = por %p69, %p70
      %p73 = scmp.ne.s32.totalorder %s56, %s72
      %p74 = scmp.eq.s32.totalorder %s27, 0
      %p75 = por %p73, %p74
      %s76 = ssub.s32 %s21, %s28
      %p77 = scmp.eq.s32.totalorder %s76, 0
      %s79 = sadd.s32 %s78, 1
      %s80 = scalar_select %p77, %s78, %s79
      %p83 = pneg %p77
      %p84 = scmp.eq.s32.totalorder %s21, 1
      %p85 = por %p83, %p84
      %p86 = scmp.ne.s32.totalorder %s78, %s81
      %p87 = scmp.eq.s32.totalorder %s21, 0
      %p88 = por %p86, %p87
      %p89 = scmp.ne.s32.totalorder %s78, %s81
      %p90 = scmp.eq.s32.totalorder %s26, 1
      %p91 = por %p89, %p90
      %p92 = scmp.ne.s32.totalorder %s81, %s82
      %p93 = scmp.eq.s32.totalorder %s26, 0
      %p94 = por %p92, %p93
      %p95 = scmp.ne.s32.totalorder %s81, %s82
      %p96 = scmp.eq.s32.totalorder %s27, 1
      %p97 = por %p95, %p96
      %p99 = scmp.ne.s32.totalorder %s82, %s98
      %p100 = scmp.eq.s32.totalorder %s27, 0
      %p101 = por %p99, %p100
      %s102 = ssub.s32 %s21, %s28
      %p103 = scmp.eq.s32.totalorder %s102, 0
      %s105 = sadd.s32 %s104, 1
      %s106 = scalar_select %p103, %s104, %s105
      %p109 = pneg %p103
      %p110 = scmp.eq.s32.totalorder %s21, 1
      %p111 = por %p109, %p110
      %p112 = scmp.ne.s32.totalorder %s104, %s107
      %p113 = scmp.eq.s32.totalorder %s21, 0
      %p114 = por %p112, %p113
      %p115 = scmp.ne.s32.totalorder %s104, %s107
      %p116 = scmp.eq.s32.totalorder %s26, 1
      %p117 = por %p115, %p116
      %p118 = scmp.ne.s32.totalorder %s107, %s108
      %p119 = scmp.eq.s32.totalorder %s26, 0
      %p120 = por %p118, %p119
      %p121 = scmp.ne.s32.totalorder %s107, %s108
      %p122 = scmp.eq.s32.totalorder %s27, 1
      %p123 = por %p121, %p122
      %p125 = scmp.ne.s32.totalorder %s108, %s124
      %p126 = scmp.eq.s32.totalorder %s27, 0
      %p127 = por %p125, %p126
      %s128 = ssub.s32 %s21, %s28
      %p129 = scmp.eq.s32.totalorder %s128, 0
      %s131 = sadd.s32 %s130, 1
      %s132 = scalar_select %p129, %s130, %s131
      %p135 = pneg %p129
      %p136 = scmp.eq.s32.totalorder %s21, 1
      %p137 = por %p135, %p136
      %p138 = scmp.ne.s32.totalorder %s130, %s133
      %p139 = scmp.eq.s32.totalorder %s21, 0
      %p140 = por %p138, %p139
      %p141 = scmp.ne.s32.totalorder %s130, %s133
      %p142 = scmp.eq.s32.totalorder %s26, 1
      %p143 = por %p141, %p142
      %p144 = scmp.ne.s32.totalorder %s133, %s134
      %p145 = scmp.eq.s32.totalorder %s26, 0
      %p146 = por %p144, %p145
      %p147 = scmp.ne.s32.totalorder %s133, %s134
      %p148 = scmp.eq.s32.totalorder %s27, 1
      %p149 = por %p147, %p148
      %p151 = scmp.ne.s32.totalorder %s134, %s150
      %p152 = scmp.eq.s32.totalorder %s27, 0
      %p153 = por %p151, %p152
      %s154 = ssub.s32 %s21, %s28
      %p155 = scmp.eq.s32.totalorder %s154, 0
      %s157 = sadd.s32 %s156, 1
      %s158 = scalar_select %p155, %s156, %s157
      %p161 = pneg %p155
      %p162 = scmp.eq.s32.totalorder %s21, 1
      %p163 = por %p161, %p162
      %p164 = scmp.ne.s32.totalorder %s156, %s159
      %p165 = scmp.eq.s32.totalorder %s21, 0
      %p166 = por %p164, %p165
      %p167 = scmp.ne.s32.totalorder %s156, %s159
      %p168 = scmp.eq.s32.totalorder %s26, 1
      %p169 = por %p167, %p168
      %p170 = scmp.ne.s32.totalorder %s159, %s160
      %p171 = scmp.eq.s32.totalorder %s26, 0
      %p172 = por %p170, %p171
      %p173 = scmp.ne.s32.totalorder %s159, %s160
      %p174 = scmp.eq.s32.totalorder %s27, 1
      %p175 = por %p173, %p174
      %p177 = scmp.ne.s32.totalorder %s160, %s176
      %p178 = scmp.eq.s32.totalorder %s27, 0
      %p179 = por %p177, %p178
      %s181 = sadd.s32 %s180, 1
      %p184 = scmp.eq.s32.totalorder %s21, 1
      %p185 = scmp.ne.s32.totalorder %s180, %s182
      %p186 = scmp.eq.s32.totalorder %s21, 0
      %p187 = por %p185, %p186
      %p188 = scmp.ne.s32.totalorder %s180, %s182
      %p189 = scmp.eq.s32.totalorder %s26, 1
      %p190 = por %p188, %p189
      %p191 = scmp.ne.s32.totalorder %s182, %s183
      %p192 = scmp.eq.s32.totalorder %s26, 0
      %p193 = por %p191, %p192
      %p194 = scmp.ne.s32.totalorder %s182, %s183
      %p195 = scmp.eq.s32.totalorder %s27, 1
      %p196 = por %p194, %p195
      %p198 = scmp.ne.s32.totalorder %s183, %s197
      %p199 = scmp.eq.s32.totalorder %s27, 0
      %p200 = por %p198, %p199
      %s202 = sadd.s32 %s201, 1
      %p205 = scmp.eq.s32.totalorder %s21, 1
      %p206 = scmp.ne.s32.totalorder %s201, %s203
      %p207 = scmp.eq.s32.totalorder %s21, 0
      %p208 = por %p206, %p207
      %p209 = scmp.ne.s32.totalorder %s201, %s203
      %p210 = scmp.eq.s32.totalorder %s26, 1
      %p211 = por %p209, %p210
      %p212 = scmp.ne.s32.totalorder %s203, %s204
      %p213 = scmp.eq.s32.totalorder %s26, 0
      %p214 = por %p212, %p213
      %p215 = scmp.ne.s32.totalorder %s203, %s204
      %p216 = scmp.eq.s32.totalorder %s27, 1
      %p217 = por %p215, %p216
      %p219 = scmp.ne.s32.totalorder %s204, %s218
      %p220 = scmp.eq.s32.totalorder %s27, 0
      %p221 = por %p219, %p220
      %s222 = ssub.s32 %s21, %s28
      %p223 = scmp.eq.s32.totalorder %s222, 0
      %s225 = sadd.s32 %s224, 1
      %s226 = scalar_select %p223, %s224, %s225
      %p229 = pneg %p223
      %p230 = scmp.eq.s32.totalorder %s21, 1
      %p231 = por %p229, %p230
      %p232 = scmp.ne.s32.totalorder %s224, %s227
      %p233 = scmp.eq.s32.totalorder %s21, 0
      %p234 = por %p232, %p233
      %p235 = scmp.ne.s32.totalorder %s224, %s227
      %p236 = scmp.eq.s32.totalorder %s26, 1
      %p237 = por %p235, %p236
      %p238 = scmp.ne.s32.totalorder %s227, %s228
      %p239 = scmp.eq.s32.totalorder %s26, 0
      %p240 = por %p238, %p239
      %p241 = scmp.ne.s32.totalorder %s227, %s228
      %p242 = scmp.eq.s32.totalorder %s27, 1
      %p243 = por %p241, %p242
      %p245 = scmp.ne.s32.totalorder %s228, %s244
      %p246 = scmp.eq.s32.totalorder %s27, 0
      %p247 = por %p245, %p246
      %p248 = scmp.le.s32.totalorder 1, %s21
      %p249 = scmp.lt.s32.totalorder %s21, 3
      %p250 = pnand %p248, %p249
      %p251 = pneg %p250
      // Predicated region
      $region9: #{tpu_custom_call.1} parent=5 // pred_check
        _
      $region10: #{tpu_custom_call.1} parent=5 // pred_check_branch
        %253 = sbr.rel (%p250) target = $region12
      $region11: #{tpu_custom_call.1} parent=5 // pred_region
        %s254 = ssub.s32 %s21, 1
        // Predicated region
        $region13: #{tpu_custom_call.1} parent=11 // pred_check
          %p255 = pneg %p42
        $region14: #{tpu_custom_call.1} parent=11 // pred_check_branch
          %257 = sbr.rel (%p255) target = $region16
        $region15: #{tpu_custom_call.1} parent=11 // pred_region
          _
        $region16: #{tpu_custom_call.1} parent=11 // pred_fallthru
          _
        // Predicated region
        $region17: #{tpu_custom_call.1} parent=11 // pred_check
          %p258 = pneg %p193
        $region18: #{tpu_custom_call.1} parent=11 // pred_check_branch
          %260 = sbr.rel (%p258) target = $region20
        $region19: #{tpu_custom_call.1} parent=11 // pred_region
          _
        $region20: #{tpu_custom_call.1} parent=11 // pred_fallthru
          _
        // Predicated region
        $region21: #{tpu_custom_call.1} parent=11 // pred_check
          %p261 = pneg %p214
        $region22: #{tpu_custom_call.1} parent=11 // pred_check_branch
          %263 = sbr.rel (%p261) target = $region24
        $region23: #{tpu_custom_call.1} parent=11 // pred_region
          _
        $region24: #{tpu_custom_call.1} parent=11 // pred_fallthru
          _
      $region12: #{tpu_custom_call.1} parent=5 // pred_fallthru
        _
      %p264 = scmp.lt.s32.totalorder %s21, 2
      // Predicated region
      $region25: #{tpu_custom_call.1} parent=5 // pred_check
        %p265 = pneg %p264
      $region26: #{tpu_custom_call.1} parent=5 // pred_check_branch
        %267 = sbr.rel (%p265) target = $region28
      $region27: #{tpu_custom_call.1} parent=5 // pred_region
        // Predicated region
        $region29: #{tpu_custom_call.1} parent=27 // pred_check
          %p268 = pneg %p62
        $region30: #{tpu_custom_call.1} parent=27 // pred_check_branch
          %270 = sbr.rel (%p268) target = $region32
        $region31: #{tpu_custom_call.1} parent=27 // pred_region
          %s271 = smul.u32 2, %s21
          %p272 = scmp.lt.s32.totalorder %s271, 3
          %s273 = scalar_select %p272, %s271, 3
          %s274 = smul.addr %s273, 2
          %s275 = smul.addr %s274, 8
          %s276 = scalar_lea.vmem %s1, %s275
          %s277 = smul.u32 2, %s21
        $region32: #{tpu_custom_call.1} parent=27 // pred_fallthru
          _
        // Predicated region
        $region33: #{tpu_custom_call.1} parent=27 // pred_check
          %p278 = pneg %p88
        $region34: #{tpu_custom_call.1} parent=27 // pred_check_branch
          %280 = sbr.rel (%p278) target = $region36
        $region35: #{tpu_custom_call.1} parent=27 // pred_region
          %s281 = sand.u32 %s78, 1
          %s282 = scalar_lea.sflag [#allocation4], %s281
          %s283 = sand.u32 %s78, 1
          %s284 = smul.addr %s283, 4
          %s285 = scalar_lea.vmem [#allocation3], %s284
          %s286 = smul.u32 2, %s21
          %s288 = ssub.s32 64, 64
          %289 = vsyncadd %s282, %s288
          %s290 = smul.addr %s286, 32
          %s291 = scalar_lea.hbm %s2, %s290
          %s292 = sshll.u32 %s285, 4
          %s293 = int_to_ptr.vmem [resolvable:$true] %s292
          %298 = dma.hbm_to_vmem [thread:$0]  %s291, 64, %s293, %s282, 32, 32, 2
        $region36: #{tpu_custom_call.1} parent=27 // pred_fallthru
          _
        // Predicated region
        $region37: #{tpu_custom_call.1} parent=27 // pred_check
          %p299 = pneg %p114
        $region38: #{tpu_custom_call.1} parent=27 // pred_check_branch
          %301 = sbr.rel (%p299) target = $region40
        $region39: #{tpu_custom_call.1} parent=27 // pred_region
          %s302 = smul.u32 2, %s21
          %p303 = scmp.lt.s32.totalorder %s302, 3
          %s304 = scalar_select %p303, %s302, 3
          %s305 = smul.addr %s304, 2
          %s306 = smul.addr %s305, 4
          %s307 = scalar_lea.vmem %s3, %s306
          %s308 = smul.u32 2, %s21
        $region40: #{tpu_custom_call.1} parent=27 // pred_fallthru
          _
        // Predicated region
        $region41: #{tpu_custom_call.1} parent=27 // pred_check
          %p309 = pneg %p140
        $region42: #{tpu_custom_call.1} parent=27 // pred_check_branch
          %311 = sbr.rel (%p309) target = $region44
        $region43: #{tpu_custom_call.1} parent=27 // pred_region
          %s312 = smul.u32 2, %s21
          %p313 = scmp.lt.s32.totalorder %s312, 3
          %s314 = scalar_select %p313, %s312, 3
          %s315 = scalar_lea.vmem %s4, %s314
          %s316 = smul.u32 2, %s21
        $region44: #{tpu_custom_call.1} parent=27 // pred_fallthru
          _
        // Predicated region
        $region45: #{tpu_custom_call.1} parent=27 // pred_check
          %p317 = pneg %p166
        $region46: #{tpu_custom_call.1} parent=27 // pred_check_branch
          %319 = sbr.rel (%p317) target = $region48
        $region47: #{tpu_custom_call.1} parent=27 // pred_region
          %s320 = smul.u32 2, %s21
          %p321 = scmp.lt.s32.totalorder %s320, 3
          %s322 = scalar_select %p321, %s320, 3
          %s323 = smul.addr %s322, 2
          %s324 = smul.addr %s323, 8
          %s325 = scalar_lea.vmem %s5, %s324
          %s326 = smul.u32 2, %s21
        $region48: #{tpu_custom_call.1} parent=27 // pred_fallthru
          _
      $region28: #{tpu_custom_call.1} parent=5 // pred_fallthru
        _
      %p327 = scmp.le.s32.totalorder 1, %s21
      %p328 = scmp.lt.s32.totalorder %s21, 3
      %p329 = pnand %p327, %p328
      %p330 = pneg %p329
      // Predicated region
      $region49: #{tpu_custom_call.1} parent=5 // pred_check
        _
      $region50: #{tpu_custom_call.1} parent=5 // pred_check_branch
        %332 = sbr.rel (%p329) target = $region52
      $region51: #{tpu_custom_call.1} parent=5 // pred_region
        %s333 = ssub.s32 %s21, 1
        %s334 = sand.u32 %s81, 1
        %s335 = scalar_lea.sflag [#allocation4], %s334
        %s336 = sand.u32 %s81, 1
        %s337 = smul.addr %s336, 4
        %s338 = scalar_lea.vmem [#allocation3], %s337
        // Predicated region
        $region53: #{tpu_custom_call.1} parent=51 // pred_check
          %p339 = pneg %p94
        $region54: #{tpu_custom_call.1} parent=51 // pred_check_branch
          %341 = sbr.rel (%p339) target = $region56
        $region55: #{tpu_custom_call.1} parent=51 // pred_region
          %342 = dma.done %s335, 64
        $region56: #{tpu_custom_call.1} parent=51 // pred_fallthru
          _
        %p343 = pneg %p42
        %p344 = pneg %p39
        %s345 = smul.u32 2, %s26
        %p346 = scmp.lt.s32.totalorder %s345, 3
        %s347 = scalar_select %p346, %s345, 3
        %s348 = smul.addr %s347, 2
        %s349 = smul.addr %s348, 8
        %s350 = scalar_lea.vmem %s1, %s349
        %p351 = pneg %p68
        %p352 = pneg %p65
        %s353 = sand.u32 %s81, 1
        %s354 = scalar_lea.sflag [#allocation4], %s353
        %s355 = sand.u32 %s81, 1
        %s356 = smul.addr %s355, 4
        %s357 = scalar_lea.vmem [#allocation3], %s356
        %p358 = pneg %p94
        %p359 = pneg %p91
        %s360 = smul.u32 2, %s26
        %p361 = scmp.lt.s32.totalorder %s360, 3
        %s362 = scalar_select %p361, %s360, 3
        %s363 = smul.addr %s362, 2
        %s364 = smul.addr %s363, 4
        %s365 = scalar_lea.vmem %s3, %s364
        %p366 = pneg %p120
        %p367 = pneg %p117
        %s368 = smul.u32 2, %s26
        %p369 = scmp.lt.s32.totalorder %s368, 3
        %s370 = scalar_select %p369, %s368, 3
        %s371 = scalar_lea.vmem %s4, %s370
        %p372 = pneg %p146
        %p373 = pneg %p143
        %s374 = smul.u32 2, %s26
        %p375 = scmp.lt.s32.totalorder %s374, 3
        %s376 = scalar_select %p375, %s374, 3
        %s377 = smul.addr %s376, 2
        %s378 = smul.addr %s377, 8
        %s379 = scalar_lea.vmem %s5, %s378
        %p380 = pneg %p172
        %p381 = pneg %p169
        %p382 = pneg %p193
        %p383 = pneg %p190
        %p384 = pneg %p214
        %p385 = pneg %p211
        %p386 = pneg %p240
        %p387 = pneg %p237
        %s388 = sand.u32 %s227, 1
        %s389 = scalar_lea.sflag [#allocation5], %s388
        %s390 = sand.u32 %s227, 1
        %s391 = smul.addr %s390, 32
        %s392 = scalar_lea.vmem [#allocation6], %s391
        %s393 = smul.u32 2, %s26
        %p394 = scmp.lt.s32.totalorder %s393, 3
        %s395 = scalar_select %p394, %s393, 3
        %s396 = smul.addr %s395, 2
        %s397 = smul.addr %s396, 8
        %s398 = scalar_lea.vmem %s1, %s397
        %s399 = smul.u32 2, %s26
        %s400 = smul.u32 2, %s26
        %s401 = smul.u32 2, %s26
        %p402 = scmp.lt.s32.totalorder %s401, 3
        %s403 = scalar_select %p402, %s401, 3
        %s404 = smul.addr %s403, 2
        %s405 = smul.addr %s404, 4
        %s406 = scalar_lea.vmem %s3, %s405
        %s407 = smul.u32 2, %s26
        %s408 = smul.u32 2, %s26
        %p409 = scmp.lt.s32.totalorder %s408, 3
        %s410 = scalar_select %p409, %s408, 3
        %s411 = scalar_lea.vmem %s4, %s410
        %s412 = smul.u32 2, %s26
        %s413 = smul.u32 2, %s26
        %p414 = scmp.lt.s32.totalorder %s413, 3
        %s415 = scalar_select %p414, %s413, 3
        %s416 = smul.addr %s415, 2
        %s417 = smul.addr %s416, 8
        %s418 = scalar_lea.vmem %s5, %s417
        %s419 = smul.u32 2, %s26
        %s420 = smul.u32 2, %s26
        %v422 = vld [vmem:[%s398] sm:$0xff]
        %v423 = vld [vmem:[%s398 + $0x8] sm:$0xff]
        %v424 = vld [vmem:[%s398 + $0x10] sm:$0xff]
        %v425 = vld [vmem:[%s398 + $0x18] sm:$0xff]
        %v426 = vpack.c.bf16 %v423, %v422
        %v427 = vpack.c.bf16 %v425, %v424
        %v428 = vld [vmem:[%s338] sm:$0x3]
        %v429 = vld [vmem:[%s338 + $0x2] sm:$0x3]
        %vm430 = vcmask 130048
        %v432 = vsel %vm430, %v428, 0
        %434 = vmatprep.subr.bf16.mxu0 0
        %435 = vmatpush1.bf16.msra.mxu0 %v426
        %436 = vmatprep.subr.bf16.mxu0 0
        %437 = vmatpush1.bf16.msra.mxu0 0
        %438 = vmatprep.subr.bf16.mxu0 0
        %439 = vmatpush1.bf16.msra.mxu0 0
        %440 = vmatprep.subr.bf16.mxu0 0
        %441 = vmatpush1.bf16.msra.mxu0 0
        %442 = vmatprep.subr.bf16.mxu0 0
        %443 = vmatpush1.bf16.msra.mxu0 0
        %444 = vmatprep.subr.bf16.mxu0 0
        %445 = vmatpush1.bf16.msra.mxu0 0
        %446 = vmatprep.subr.bf16.mxu0 0
        %447 = vmatpush1.bf16.msra.mxu0 0
        %448 = vmatprep.subr.bf16.mxu0 0
        %449 = vmatpush1.bf16.msra.mxu0 0
        %450 = vmatprep.subr.bf16.mxu0 0
        %451 = vmatpush1.bf16.msra.mxu0 0
        %452 = vmatprep.subr.bf16.mxu0 0
        %453 = vmatpush1.bf16.msra.mxu0 0
        %454 = vmatprep.subr.bf16.mxu0 0
        %455 = vmatpush1.bf16.msra.mxu0 0
        %456 = vmatprep.subr.bf16.mxu0 0
        %457 = vmatpush1.bf16.msra.mxu0 0
        %458 = vmatprep.subr.bf16.mxu0 0
        %459 = vmatpush1.bf16.msra.mxu0 0
        %460 = vmatprep.subr.bf16.mxu0 0
        %461 = vmatpush1.bf16.msra.mxu0 0
        %462 = vmatprep.subr.bf16.mxu0 0
        %463 = vmatpush1.bf16.msra.mxu0 0
        %464 = vmatprep.subr.bf16.mxu0 0
        %465 = vmatpush1.bf16.msra.mxu0 0
        %466 = vmatprep.mubr.bf16.mxu0 0
        %467 = vmatmul.mubr.bf16.gmra.mrb[0].mxu0 %v432
        %v468 = vpop.f32.mrb[0].mxu0
        %v469 = vadd.f32 0.0, %v468
        %v470 = vpop.f32.mrb[0].mxu0
        %v471 = vpop.f32.mrb[0].mxu0
        %v472 = vpop.f32.mrb[0].mxu0
        %473 = vdwg.mxu0
        %v475 = vsel %vm430, %v429, 0
        %477 = vmatprep.subr.bf16.mxu0 0
        %478 = vmatpush1.bf16.msra.mxu0 %v427
        %479 = vmatprep.subr.bf16.mxu0 0
        %480 = vmatpush1.bf16.msra.mxu0 0
        %481 = vmatprep.subr.bf16.mxu0 0
        %482 = vmatpush1.bf16.msra.mxu0 0
        %483 = vmatprep.subr.bf16.mxu0 0
        %484 = vmatpush1.bf16.msra.mxu0 0
        %485 = vmatprep.subr.bf16.mxu0 0
        %486 = vmatpush1.bf16.msra.mxu0 0
        %487 = vmatprep.subr.bf16.mxu0 0
        %488 = vmatpush1.bf16.msra.mxu0 0
        %489 = vmatprep.subr.bf16.mxu0 0
        %490 = vmatpush1.bf16.msra.mxu0 0
        %491 = vmatprep.subr.bf16.mxu0 0
        %492 = vmatpush1.bf16.msra.mxu0 0
        %493 = vmatprep.subr.bf16.mxu0 0
        %494 = vmatpush1.bf16.msra.mxu0 0
        %495 = vmatprep.subr.bf16.mxu0 0
        %496 = vmatpush1.bf16.msra.mxu0 0
        %497 = vmatprep.subr.bf16.mxu0 0
        %498 = vmatpush1.bf16.msra.mxu0 0
        %499 = vmatprep.subr.bf16.mxu0 0
        %500 = vmatpush1.bf16.msra.mxu0 0
        %501 = vmatprep.subr.bf16.mxu0 0
        %502 = vmatpush1.bf16.msra.mxu0 0
        %503 = vmatprep.subr.bf16.mxu0 0
        %504 = vmatpush1.bf16.msra.mxu0 0
        %505 = vmatprep.subr.bf16.mxu0 0
        %506 = vmatpush1.bf16.msra.mxu0 0
        %507 = vmatprep.subr.bf16.mxu0 0
        %508 = vmatpush1.bf16.msra.mxu0 0
        %509 = vmatprep.mubr.bf16.mxu0 0
        %510 = vmatmul.mubr.bf16.gmra.mrb[0].mxu0 %v475
        %v511 = vpop.f32.mrb[0].mxu0
        %v512 = vadd.f32 0.0, %v511
        %v513 = vpop.f32.mrb[0].mxu0
        %v514 = vpop.f32.mrb[0].mxu0
        %v515 = vpop.f32.mrb[0].mxu0
        %516 = vdwg.mxu0
        %v517 = vld [vmem:[%s6] sm:$0xf]
        %v518 = vld [vmem:[%s6 + $0x4] sm:$0xf]
        %v519 = vld [vmem:[%s6 + $0x8] sm:$0xf]
        %v520 = vld [vmem:[%s6 + $0xc] sm:$0xf]
        %v521 = vld [vmem:[%s6 + $0x10] sm:$0xf]
        %v522 = vld [vmem:[%s6 + $0x14] sm:$0xf]
        %v523 = vld [vmem:[%s6 + $0x18] sm:$0xf]
        %v524 = vld [vmem:[%s6 + $0x1c] sm:$0xf]
        %v525 = vld [vmem:[%s6 + $0x20] sm:$0xf]
        %v526 = vld [vmem:[%s6 + $0x24] sm:$0xf]
        %v527 = vld [vmem:[%s6 + $0x28] sm:$0xf]
        %v528 = vld [vmem:[%s6 + $0x2c] sm:$0xf]
        %v529 = vld [vmem:[%s6 + $0x30] sm:$0xf]
        %v530 = vld [vmem:[%s6 + $0x34] sm:$0xf]
        %v531 = vld [vmem:[%s6 + $0x38] sm:$0xf]
        %v532 = vld [vmem:[%s6 + $0x3c] sm:$0xf]
        %v533 = vpack.c.bf16 %v469, %v469
        %v534 = vpack.c.bf16 %v512, %v512
        %v551 = vunpack.c.l.b16 %v517
        %v552 = vunpack.c.l.b16 %v518
        %v553 = vunpack.c.l.b16 %v519
        %v554 = vunpack.c.l.b16 %v520
        %v555 = vunpack.c.l.b16 %v521
        %v556 = vunpack.c.l.b16 %v522
        %v557 = vunpack.c.l.b16 %v523
        %v558 = vunpack.c.l.b16 %v524
        %v559 = vunpack.c.l.b16 %v525
        %v560 = vunpack.c.l.b16 %v526
        %v561 = vunpack.c.l.b16 %v527
        %v562 = vunpack.c.l.b16 %v528
        %v563 = vunpack.c.l.b16 %v529
        %v564 = vunpack.c.l.b16 %v530
        %v565 = vunpack.c.l.b16 %v531
        %v566 = vunpack.c.l.b16 %v532
        %v567 = vpack.c.b16 %v552, %v551
        %v568 = vpack.c.b16 %v554, %v553
        %v569 = vpack.c.b16 %v556, %v555
        %v570 = vpack.c.b16 %v558, %v557
        %v571 = vpack.c.b16 %v560, %v559
        %v572 = vpack.c.b16 %v562, %v561
        %v573 = vpack.c.b16 %v564, %v563
        %v574 = vpack.c.b16 %v566, %v565
        %583 = vmatprep.subr.bf16.mxu0 0
        %584 = vmatpush1.bf16.msra.mxu0 %v567
        %585 = vmatprep.subr.bf16.mxu0 0
        %586 = vmatpush1.bf16.msra.mxu0 %v568
        %587 = vmatprep.subr.bf16.mxu0 0
        %588 = vmatpush1.bf16.msra.mxu0 %v569
        %589 = vmatprep.subr.bf16.mxu0 0
        %590 = vmatpush1.bf16.msra.mxu0 %v570
        %591 = vmatprep.subr.bf16.mxu0 0
        %592 = vmatpush1.bf16.msra.mxu0 %v571
        %593 = vmatprep.subr.bf16.mxu0 0
        %594 = vmatpush1.bf16.msra.mxu0 %v572
        %595 = vmatprep.subr.bf16.mxu0 0
        %596 = vmatpush1.bf16.msra.mxu0 %v573
        %597 = vmatprep.subr.bf16.mxu0 0
        %598 = vmatpush1.bf16.msra.mxu0 %v574
        %599 = vmatprep.subr.bf16.mxu0 0
        %600 = vmatpush1.bf16.msra.mxu0 0
        %601 = vmatprep.subr.bf16.mxu0 0
        %602 = vmatpush1.bf16.msra.mxu0 0
        %603 = vmatprep.subr.bf16.mxu0 0
        %604 = vmatpush1.bf16.msra.mxu0 0
        %605 = vmatprep.subr.bf16.mxu0 0
        %606 = vmatpush1.bf16.msra.mxu0 0
        %607 = vmatprep.subr.bf16.mxu0 0
        %608 = vmatpush1.bf16.msra.mxu0 0
        %609 = vmatprep.subr.bf16.mxu0 0
        %610 = vmatpush1.bf16.msra.mxu0 0
        %611 = vmatprep.subr.bf16.mxu0 0
        %612 = vmatpush1.bf16.msra.mxu0 0
        %613 = vmatprep.subr.bf16.mxu0 0
        %614 = vmatpush1.bf16.msra.mxu0 0
        %615 = vmatprep.mubr.bf16.mxu0 0
        %616 = vmatmul.mubr.bf16.gmra.mrb[0].mxu0 %v533
        %v617 = vpop.f32.mrb[0].mxu0
        %v618 = vadd.f32 0.0, %v617
        %v619 = vpop.f32.mrb[0].mxu0
        %v620 = vpop.f32.mrb[0].mxu0
        %v621 = vpop.f32.mrb[0].mxu0
        %622 = vdwg.mxu0
        %623 = vmatprep.subr.bf16.mxu0 0
        %624 = vmatpush1.bf16.msra.mxu0 %v567
        %625 = vmatprep.subr.bf16.mxu0 0
        %626 = vmatpush1.bf16.msra.mxu0 %v568
        %627 = vmatprep.subr.bf16.mxu0 0
        %628 = vmatpush1.bf16.msra.mxu0 %v569
        %629 = vmatprep.subr.bf16.mxu0 0
        %630 = vmatpush1.bf16.msra.mxu0 %v570
        %631 = vmatprep.subr.bf16.mxu0 0
        %632 = vmatpush1.bf16.msra.mxu0 %v571
        %633 = vmatprep.subr.bf16.mxu0 0
        %634 = vmatpush1.bf16.msra.mxu0 %v572
        %635 = vmatprep.subr.bf16.mxu0 0
        %636 = vmatpush1.bf16.msra.mxu0 %v573
        %637 = vmatprep.subr.bf16.mxu0 0
        %638 = vmatpush1.bf16.msra.mxu0 %v574
        %639 = vmatprep.subr.bf16.mxu0 0
        %640 = vmatpush1.bf16.msra.mxu0 0
        %641 = vmatprep.subr.bf16.mxu0 0
        %642 = vmatpush1.bf16.msra.mxu0 0
        %643 = vmatprep.subr.bf16.mxu0 0
        %644 = vmatpush1.bf16.msra.mxu0 0
        %645 = vmatprep.subr.bf16.mxu0 0
        %646 = vmatpush1.bf16.msra.mxu0 0
        %647 = vmatprep.subr.bf16.mxu0 0
        %648 = vmatpush1.bf16.msra.mxu0 0
        %649 = vmatprep.subr.bf16.mxu0 0
        %650 = vmatpush1.bf16.msra.mxu0 0
        %651 = vmatprep.subr.bf16.mxu0 0
        %652 = vmatpush1.bf16.msra.mxu0 0
        %653 = vmatprep.subr.bf16.mxu0 0
        %654 = vmatpush1.bf16.msra.mxu0 0
        %655 = vmatprep.mubr.bf16.mxu0 0
        %656 = vmatmul.mubr.bf16.gmra.mrb[0].mxu0 %v534
        %v657 = vpop.f32.mrb[0].mxu0
        %v658 = vadd.f32 0.0, %v657
        %v659 = vpop.f32.mrb[0].mxu0
        %v660 = vpop.f32.mrb[0].mxu0
        %v661 = vpop.f32.mrb[0].mxu0
        %662 = vdwg.mxu0
        %v663 = vld [vmem:[%s411] sm:$0x1]
        %v664 = vld [vmem:[%s411 + $0x1] sm:$0x1]
        %v665 = vsub.f32 %v618, %v469
        %v666 = vsub.f32 %v658, %v512
        %v669 = vlaneseq
        %v670 = vshrl.u32 %v669, 7
        %v671 = vsub.s32 0, %v670
        %v672 = vrot.slane %v663, %v671
        %v673 = vlaneseq
        %v674 = vshrl.u32 %v673, 7
        %v675 = vsub.s32 0, %v674
        %v676 = vrot.slane %v664, %v675
        %677 = vset.pattern.permute.xlu0 0
        %678 = vperm.xlu0 %677, %v672
        %v679 = vpop.permute.xlu0 %678
        %681 = vset.pattern.permute.xlu0 0
        %682 = vperm.xlu0 %681, %v676
        %v683 = vpop.permute.xlu0 %682
        %v685 = vmul.f32 %v679, %v665
        %v686 = vmul.f32 %v683, %v666
        %v687 = vadd.f32 %v469, %v685
        %v688 = vadd.f32 %v512, %v686
        %v689 = vld [vmem:[%s406] sm:$0xf]
        %v690 = vld [vmem:[%s406 + $0x4] sm:$0xf]
        %v691 = vld [vmem:[%s406 + $0x8] sm:$0xf]
        %v692 = vld [vmem:[%s406 + $0xc] sm:$0xf]
        %v693 = vpack.c.bf16 %v687, %v687
        %v694 = vpack.c.bf16 %v688, %v688
        %v695 = vld [vmem:[%s418] sm:$0xff]
        %v696 = vld [vmem:[%s418 + $0x8] sm:$0xff]
        %v697 = vld [vmem:[%s418 + $0x10] sm:$0xff]
        %v698 = vld [vmem:[%s418 + $0x18] sm:$0xff]
        %v699 = vld [vmem:[%s7] sm:$0x1]
        %701 = vset.pattern.permute.xlu0 0
        %702 = vperm.xlu0 %701, %v695
        %v703 = vpop.permute.xlu0 %702
        %706 = vset.pattern.permute.xlu0 0
        %707 = vperm.xlu0 %706, %v696
        %v708 = vpop.permute.xlu0 %707
        %711 = vset.pattern.permute.xlu0 0
        %712 = vperm.xlu0 %711, %v697
        %v713 = vpop.permute.xlu0 %712
        %716 = vset.pattern.permute.xlu0 0
        %717 = vperm.xlu0 %716, %v698
        %v718 = vpop.permute.xlu0 %717
        %v721 = vlaneseq
        %v722 = vshrl.u32 %v721, 7
        %v723 = vsub.s32 0, %v722
        %v724 = vrot.slane %v699, %v723
        %v726 = vmul.f32 %v703, %v724
        %v727 = vmul.f32 %v708, %v724
        %v728 = vmul.f32 %v713, %v724
        %v729 = vmul.f32 %v718, %v724
        %v732 = vunpack.c.l.b16 %v689
        %v733 = vunpack.c.l.b16 %v690
        %v734 = vpack.c.b16 %v733, %v732
        %vm735 = vcmask 31744
        %v737 = vsel %vm735, %v734, 0
        %vm739 = vcmask 1041408
        %v741 = vsel %vm739, %v693, 0
        %743 = vmatprep.subr.bf16.mxu0 0
        %744 = vmatpush1.bf16.msra.mxu0 %v741
        %745 = vmatprep.subr.bf16.mxu0 0
        %746 = vmatpush1.bf16.msra.mxu0 0
        %747 = vmatprep.subr.bf16.mxu0 0
        %748 = vmatpush1.bf16.msra.mxu0 0
        %749 = vmatprep.subr.bf16.mxu0 0
        %750 = vmatpush1.bf16.msra.mxu0 0
        %751 = vmatprep.subr.bf16.mxu0 0
        %752 = vmatpush1.bf16.msra.mxu0 0
        %753 = vmatprep.subr.bf16.mxu0 0
        %754 = vmatpush1.bf16.msra.mxu0 0
        %755 = vmatprep.subr.bf16.mxu0 0
        %756 = vmatpush1.bf16.msra.mxu0 0
        %757 = vmatprep.subr.bf16.mxu0 0
        %758 = vmatpush1.bf16.msra.mxu0 0
        %759 = vmatprep.subr.bf16.mxu0 0
        %760 = vmatpush1.bf16.msra.mxu0 0
        %761 = vmatprep.subr.bf16.mxu0 0
        %762 = vmatpush1.bf16.msra.mxu0 0
        %763 = vmatprep.subr.bf16.mxu0 0
        %764 = vmatpush1.bf16.msra.mxu0 0
        %765 = vmatprep.subr.bf16.mxu0 0
        %766 = vmatpush1.bf16.msra.mxu0 0
        %767 = vmatprep.subr.bf16.mxu0 0
        %768 = vmatpush1.bf16.msra.mxu0 0
        %769 = vmatprep.subr.bf16.mxu0 0
        %770 = vmatpush1.bf16.msra.mxu0 0
        %771 = vmatprep.subr.bf16.mxu0 0
        %772 = vmatpush1.bf16.msra.mxu0 0
        %773 = vmatprep.subr.bf16.mxu0 0
        %774 = vmatpush1.bf16.msra.mxu0 0
        %775 = vmatprep.mubr.bf16.mxu0 0
        %776 = vmatmul.mubr.bf16.gmra.mrb[0].mxu0 %v737
        %v777 = vpop.f32.mrb[0].mxu0
        %v778 = vadd.f32 %v726, %v777
        %v779 = vpop.f32.mrb[0].mxu0
        %v780 = vpop.f32.mrb[0].mxu0
        %v781 = vadd.f32 %v727, %v780
        %v782 = vpop.f32.mrb[0].mxu0
        %783 = vdwg.mxu0
        %v786 = vunpack.c.l.b16 %v691
        %v787 = vunpack.c.l.b16 %v692
        %v788 = vpack.c.b16 %v787, %v786
        %v790 = vsel %vm735, %v788, 0
        %v793 = vsel %vm739, %v694, 0
        %795 = vmatprep.subr.bf16.mxu0 0
        %796 = vmatpush1.bf16.msra.mxu0 %v793
        %797 = vmatprep.subr.bf16.mxu0 0
        %798 = vmatpush1.bf16.msra.mxu0 0
        %799 = vmatprep.subr.bf16.mxu0 0
        %800 = vmatpush1.bf16.msra.mxu0 0
        %801 = vmatprep.subr.bf16.mxu0 0
        %802 = vmatpush1.bf16.msra.mxu0 0
        %803 = vmatprep.subr.bf16.mxu0 0
        %804 = vmatpush1.bf16.msra.mxu0 0
        %805 = vmatprep.subr.bf16.mxu0 0
        %806 = vmatpush1.bf16.msra.mxu0 0
        %807 = vmatprep.subr.bf16.mxu0 0
        %808 = vmatpush1.bf16.msra.mxu0 0
        %809 = vmatprep.subr.bf16.mxu0 0
        %810 = vmatpush1.bf16.msra.mxu0 0
        %811 = vmatprep.subr.bf16.mxu0 0
        %812 = vmatpush1.bf16.msra.mxu0 0
        %813 = vmatprep.subr.bf16.mxu0 0
        %814 = vmatpush1.bf16.msra.mxu0 0
        %815 = vmatprep.subr.bf16.mxu0 0
        %816 = vmatpush1.bf16.msra.mxu0 0
        %817 = vmatprep.subr.bf16.mxu0 0
        %818 = vmatpush1.bf16.msra.mxu0 0
        %819 = vmatprep.subr.bf16.mxu0 0
        %820 = vmatpush1.bf16.msra.mxu0 0
        %821 = vmatprep.subr.bf16.mxu0 0
        %822 = vmatpush1.bf16.msra.mxu0 0
        %823 = vmatprep.subr.bf16.mxu0 0
        %824 = vmatpush1.bf16.msra.mxu0 0
        %825 = vmatprep.subr.bf16.mxu0 0
        %826 = vmatpush1.bf16.msra.mxu0 0
        %827 = vmatprep.mubr.bf16.mxu0 0
        %828 = vmatmul.mubr.bf16.gmra.mrb[0].mxu0 %v790
        %v829 = vpop.f32.mrb[0].mxu0
        %v830 = vadd.f32 %v728, %v829
        %v831 = vpop.f32.mrb[0].mxu0
        %v832 = vpop.f32.mrb[0].mxu0
        %v833 = vadd.f32 %v729, %v832
        %v834 = vpop.f32.mrb[0].mxu0
        %835 = vdwg.mxu0
        %s836 = sld [smem:[#allocation2]]
        %v837 = vstv %s836
        %v838 = vmul.f32 %v837, %v778
        %v839 = vmul.f32 %v837, %v781
        %v840 = vmul.f32 %v837, %v830
        %v841 = vmul.f32 %v837, %v833
        %v842 = vadd.f32 %v422, %v838
        %v843 = vadd.f32 %v423, %v839
        %v844 = vadd.f32 %v424, %v840
        %v845 = vadd.f32 %v425, %v841
        %846 = vst [vmem:[%s392] sm:$0xff] %v842
        %847 = vst [vmem:[%s392 + $0x8] sm:$0xff] %v843
        %848 = vst [vmem:[%s392 + $0x10] sm:$0xff] %v844
        %849 = vst [vmem:[%s392 + $0x18] sm:$0xff] %v845
        %s850 = sand.u32 %s227, 1
        %s851 = scalar_lea.sflag [#allocation5], %s850
        %s852 = sand.u32 %s227, 1
        %s853 = smul.addr %s852, 32
        %s854 = scalar_lea.vmem [#allocation6], %s853
        // Predicated region
        $region57: #{tpu_custom_call.1} parent=51 // pred_check
          %p855 = pneg %p237
        $region58: #{tpu_custom_call.1} parent=51 // pred_check_branch
          %857 = sbr.rel (%p855) target = $region60
        $region59: #{tpu_custom_call.1} parent=51 // pred_region
          %s858 = smul.u32 2, %s26
          %s860 = ssub.s32 512, 512
          %861 = vsyncadd %s851, %s860
          %s862 = smul.addr %s858, 2
          %s863 = smul.addr %s862, 128
          %s864 = scalar_lea.hbm %s8, %s863
          %s865 = sshll.u32 %s854, 4
          %s866 = int_to_ptr.vmem [resolvable:$true] %s865
          %871 = dma.vmem_to_hbm [thread:$0]  %s866, 512, %s864, %s851, 128, 128, 8
        $region60: #{tpu_custom_call.1} parent=51 // pred_fallthru
          _
      $region52: #{tpu_custom_call.1} parent=5 // pred_fallthru
        _
      %p872 = scmp.le.s32.totalorder 2, %s21
      // Predicated region
      $region61: #{tpu_custom_call.1} parent=5 // pred_check
        %p873 = pneg %p872
      $region62: #{tpu_custom_call.1} parent=5 // pred_check_branch
        %875 = sbr.rel (%p873) target = $region64
      $region63: #{tpu_custom_call.1} parent=5 // pred_region
        %s876 = ssub.s32 %s21, 2
        // Predicated region
        $region65: #{tpu_custom_call.1} parent=63 // pred_check
          %p877 = pneg %p243
        $region66: #{tpu_custom_call.1} parent=63 // pred_check_branch
          %879 = sbr.rel (%p877) target = $region68
        $region67: #{tpu_custom_call.1} parent=63 // pred_region
          %s880 = sand.u32 %s228, 1
          %s881 = scalar_lea.sflag [#allocation5], %s880
          %s882 = sand.u32 %s228, 1
          %s883 = smul.addr %s882, 32
          %s884 = scalar_lea.vmem [#allocation6], %s883
          %885 = dma.done %s881, 512
        $region68: #{tpu_custom_call.1} parent=63 // pred_fallthru
          _
      $region64: #{tpu_custom_call.1} parent=5 // pred_fallthru
        _
    $region6: #{tpu_custom_call.1} parent=1 // loop_footer
      %s25 = sadd.s32 1, %s21
    $region7: #{tpu_custom_call.1} parent=1 // loop_footer_branch
      %20 = sbr.rel target = $region3
    $region8: #{tpu_custom_call.1} parent=1 // loop_exit
      _
    %886 = vsyncpa [#allocation4], 1
    %s887 = scalar_lea.sflag [#allocation4], 1
    %888 = vsyncpa %s887, 1
    %889 = vsyncpa [#allocation5], 1
    %s890 = scalar_lea.sflag [#allocation5], 1
    %891 = vsyncpa %s890, 1

</llo_original>
